<compile_context>
chip_gen: v7x
topology: tpu7x:2x2x1
jax: 0.10.0
libtpu: 0.0.40
codegen_flags: <defaults>
</compile_context>

<pallas_src>
import functools

import jax
import jax.numpy as jnp
from jax import lax
from jax.experimental import pallas as pl
from jax.experimental.pallas import tpu as pltpu


# ----------------------------------------------------------------------------
# Helpers
# ----------------------------------------------------------------------------
def _round_up(x, m):
    return (x + m - 1) // m * m


def _pick_tile(dim, pref, quantum):
    """Largest power-of-two tile <= pref that divides dim (>= quantum), else full dim."""
    t = pref
    while t >= quantum:
        if dim % t == 0:
            return t
        t //= 2
    return dim


def _pad_rows(a, rows):
    if a.shape[0] == rows:
        return a
    return jnp.pad(a, ((0, rows - a.shape[0]), (0, 0)))


@functools.lru_cache(maxsize=None)
def _vmem_limit():
    """Generation-aware VMEM budget (v7x: 64 MiB physical; v5e/v6e: 128 MiB)."""
    cap = 128 * 1024 * 1024
    try:
        cap = int(pltpu.get_tpu_info().vmem_capacity_bytes)
    except Exception:
        pass
    return max(32 * 1024 * 1024, min(100 * 1024 * 1024, (cap * 3) // 4))


def _compiler_params(dims):
    return pltpu.CompilerParams(dimension_semantics=dims,
                                vmem_limit_bytes=_vmem_limit())


# ----------------------------------------------------------------------------
# Tiled matmul kernel (f32 accumulator scratch, optional fused tanh epilogue)
# ----------------------------------------------------------------------------
def _matmul_kernel(x_ref, w_ref, o_ref, acc_ref, *, activation):
    @pl.when(pl.program_id(2) == 0)
    def _init():
        acc_ref[...] = jnp.zeros_like(acc_ref)

    acc_ref[...] += jnp.dot(x_ref[...], w_ref[...],
                            preferred_element_type=jnp.float32)

    @pl.when(pl.program_id(2) == pl.num_programs(2) - 1)
    def _done():
        acc = acc_ref[...]
        if activation == "tanh":
            acc = jnp.tanh(acc)
        o_ref[...] = acc.astype(o_ref.dtype)


def pallas_matmul(x, w, *, activation=None, out_dtype=None,
                  tm=512, tn=512, tk=512):
    """x: (M, K), w: (K, N) -> (M, N).  Operand dtype == MXU dtype (cast upstream)."""
    M, K = x.shape
    K2, N = w.shape
    assert K == K2
    out_dtype = out_dtype or x.dtype
    rq = 256 if M >= 256 else 8
    Mp = _round_up(M, rq)
    xp = _pad_rows(x, Mp)
    tm = _pick_tile(Mp, tm, 8)
    tk = _pick_tile(K, tk, 128)
    tn = _pick_tile(N, tn, 128)
    grid = (Mp // tm, N // tn, K // tk)
    out = pl.pallas_call(
        functools.partial(_matmul_kernel, activation=activation),
        out_shape=jax.ShapeDtypeStruct((Mp, N), out_dtype),
        grid=grid,
        in_specs=[pl.BlockSpec((tm, tk), lambda i, j, k: (i, k)),
                  pl.BlockSpec((tk, tn), lambda i, j, k: (k, j))],
        out_specs=pl.BlockSpec((tm, tn), lambda i, j, k: (i, j)),
        scratch_shapes=[pltpu.VMEM((tm, tn), jnp.float32)],
        compiler_params=_compiler_params(("parallel", "parallel", "arbitrary")),
    )(xp, w)
    return out[:M] if Mp != M else out


# ----------------------------------------------------------------------------
# Fused token-shift-mix (+ fused tiny LoRA) + projection:
#   out = act( (x + dx * (time_maa [+ lora @ w2])) @ w )
# The mix block is formed in VMEM; the (M, C) mix tensors never touch HBM.
# ----------------------------------------------------------------------------
def _mix_matmul_kernel(*refs, activation, has_lora):
    if has_lora:
        x_ref, dx_ref, lora_ref, w2_ref, maa_ref, w_ref, o_ref, acc_ref = refs
    else:
        x_ref, dx_ref, maa_ref, w_ref, o_ref, acc_ref = refs

    @pl.when(pl.program_id(2) == 0)
    def _init():
        acc_ref[...] = jnp.zeros_like(acc_ref)

    m = maa_ref[...].astype(jnp.float32)                 # (1, tk)
    if has_lora:
        mix = jnp.dot(lora_ref[...], w2_ref[...],
                      preferred_element_type=jnp.float32)  # (tm, tk)
        m = m + mix
    xi = x_ref[...].astype(jnp.float32) + dx_ref[...].astype(jnp.float32) * m
    acc_ref[...] += jnp.dot(xi.astype(w_ref.dtype), w_ref[...],
                            preferred_element_type=jnp.float32)

    @pl.when(pl.program_id(2) == pl.num_programs(2) - 1)
    def _done():
        acc = acc_ref[...]
        if activation == "tanh":
            acc = jnp.tanh(acc)
        o_ref[...] = acc.astype(o_ref.dtype)


def pallas_mix_matmul(x, dx, maa, w, *, lora=None, w2=None, activation=None,
                      out_dtype=None, tm=512, tn=512, tk=512):
    M, K = x.shape
    K2, N = w.shape
    assert K == K2
    has_lora = lora is not None
    if has_lora:
        assert w2 is not None and w2.shape[1] == K
    out_dtype = out_dtype or x.dtype
    maa2 = maa.reshape(1, K)

    rq = 256 if M >= 256 else 8
    Mp = _round_up(M, rq)
    xp, dxp = _pad_rows(x, Mp), _pad_rows(dx, Mp)
    tm = _pick_tile(Mp, tm, 8)
    tk = _pick_tile(K, tk, 128)
    tn = _pick_tile(N, tn, 128)
    grid = (Mp // tm, N // tn, K // tk)

    xspec = pl.BlockSpec((tm, tk), lambda i, j, k: (i, k))
    in_specs = [xspec, xspec]
    args = [xp, dxp]
    if has_lora:
        d_lora = lora.shape[1]
        in_specs += [pl.BlockSpec((tm, d_lora), lambda i, j, k: (i, 0)),
                     pl.BlockSpec((d_lora, tk), lambda i, j, k: (0, k))]
        args += [_pad_rows(lora, Mp), w2]
    in_specs += [pl.BlockSpec((1, tk), lambda i, j, k: (0, k)),
                 pl.BlockSpec((tk, tn), lambda i, j, k: (k, j))]
    args += [maa2, w]

    out = pl.pallas_call(
        functools.partial(_mix_matmul_kernel, activation=activation,
                          has_lora=has_lora),
        out_shape=jax.ShapeDtypeStruct((Mp, N), out_dtype),
        grid=grid,
        in_specs=in_specs,
        out_specs=pl.BlockSpec((tm, tn), lambda i, j, k: (i, j)),
        scratch_shapes=[pltpu.VMEM((tm, tn), jnp.float32)],
        compiler_params=_compiler_params(("parallel", "parallel", "arbitrary")),
    )(*args)
    return out[:M] if Mp != M else out


# ----------------------------------------------------------------------------
# Chunked + sub-chunked gated-linear-attention kernel, all heads per grid step.
# Fuses: time_decay bias add, g = -exp(decay), k *= (1 - exp(g)), qk scale,
# sigmoid(gate) and output gating.  grid = (B, T/CT); carried state (H, Dv, Dk).
# All decay exponentials are re-referenced per sub-chunk (bounded, no overflow).
# ----------------------------------------------------------------------------
def _gla_kernel(q_ref, k_ref, v_ref, dec_ref, td_ref, gate_ref, o_ref, s_ref,
                *, H, Hkv, Dh, SC, scale, mxu_dtype):
    c = pl.program_id(1)

    @pl.when(c == 0)
    def _init():
        s_ref[...] = jnp.zeros_like(s_ref)

    CT = q_ref.shape[1]
    n_rep = H // Hkv
    NS = CT // SC

    q2 = q_ref[0].astype(jnp.float32) * scale                 # (CT, H*Dh)
    k2 = k_ref[0].astype(jnp.float32)                         # (CT, Hkv*Dh)
    v2 = v_ref[0].astype(jnp.float32)                         # (CT, Hkv*Dh)
    dec2 = dec_ref[0].astype(jnp.float32) + td_ref[...].astype(jnp.float32)
    gate2 = jax.nn.sigmoid(gate_ref[0].astype(jnp.float32))   # (CT, H*Dh)

    g2 = -jnp.exp(dec2)                                       # log-decay, <= 0
    kfac2 = 1.0 - jnp.exp(g2)                                 # fused key factor

    row = lax.broadcasted_iota(jnp.int32, (SC, SC), 0)
    col = lax.broadcasted_iota(jnp.int32, (SC, SC), 1)
    causal = row >= col
    L = causal.astype(jnp.float32)                            # cumsum-by-matmul

    head_out = []
    # TODO(synk): for very large H, switch this unrolled python loop to a batched
    # dot_general over a head axis to keep compile time down.
    for h in range(H):
        hs = slice(h * Dh, (h + 1) * Dh)
        kvh = h // n_rep                                      # GQA aliasing
        ks_ = slice(kvh * Dh, (kvh + 1) * Dh)

        q_h = q2[:, hs]
        g_h = g2[:, hs]
        k_h = k2[:, ks_] * kfac2[:, hs]                       # effective key
        v_h = v2[:, ks_]
        S_h = s_ref[h]                                        # (Dv, Dk) f32

        o_parts = []
        for s in range(NS):
            rs = slice(s * SC, (s + 1) * SC)
            gs = g_h[rs]
            # inclusive cumulative log-decay within the sub-chunk (bounded)
            gc = jnp.dot(L, gs, preferred_element_type=jnp.float32)   # (SC, Dh)
            g_end = gc[SC - 1:SC, :]                                  # (1, Dh)

            q_dec = (q_h[rs] * jnp.exp(gc)).astype(mxu_dtype)         # exp <= 1
            k_in = (k_h[rs] * jnp.exp(-gc)).astype(mxu_dtype)         # <= e^{SC|g|}
            k_out = (k_h[rs] * jnp.exp(g_end - gc)).astype(mxu_dtype)  # exp <= 1
            v_s = v_h[rs].astype(mxu_dtype)

            # inter-(sub)chunk contribution from carried state S (Dv, Dk)
            o_s = lax.dot_general(q_dec, S_h.astype(mxu_dtype),
                                  (((1,), (1,)), ((), ())),
                                  preferred_element_type=jnp.float32)  # (SC, Dv)
            # intra-sub-chunk causal contribution
            A = lax.dot_general(q_dec, k_in, (((1,), (1,)), ((), ())),
                                preferred_element_type=jnp.float32)    # (SC, SC)
            A = jnp.where(causal, A, 0.0).astype(mxu_dtype)
            o_s = o_s + jnp.dot(A, v_s, preferred_element_type=jnp.float32)
            o_parts.append(o_s)

            # state update with bounded decay factors:
            #   S <- exp(g_end) * S + sum_j v_j (k_j * exp(g_end - gc_j))^T
            kv = lax.dot_general(v_s, k_out, (((0,), (0,)), ((), ())),
                                 preferred_element_type=jnp.float32)   # (Dv, Dk)
            S_h = jnp.exp(g_end) * S_h + kv

        s_ref[h] = S_h
        head_out.append(o_parts[0] if NS == 1
                        else jnp.concatenate(o_parts, axis=0))

    o = head_out[0] if H == 1 else jnp.concatenate(head_out, axis=1)   # (CT, H*Dh)
    o_ref[0] = (o * gate2).astype(o_ref.dtype)                         # lane-dense


def pallas_gla_gated(q, k, v, dec, td, gate, *, H, Hkv, Dh,
                     chunk=128, subchunk=32, mxu_dtype=jnp.bfloat16):
    """q, dec, gate: (B, T, H*Dh); k, v: (B, T, Hkv*Dh); td: (H, Dh)."""
    B, T, _ = q.shape
    SC = subchunk
    CT = min(chunk, _round_up(T, 8))
    if CT >= SC:
        CT = _round_up(CT, SC)
    else:
        SC = CT
    TP = _round_up(T, CT)
    NC = TP // CT
    scale = Dh ** (-0.5)  # per the provided fla_chunk_gla (scale = head_dim**-0.5)

    def pad_t(a):
        if TP == T:
            return a
        return jnp.pad(a, ((0, 0), (0, TP - T), (0, 0)))

    qp, kp, vp, decp, gatep = map(pad_t, (q, k, v, dec, gate))
    td2 = td.reshape(1, H * Dh).astype(jnp.float32)

    qspec = pl.BlockSpec((1, CT, H * Dh), lambda b, c: (b, c, 0))
    kvspec = pl.BlockSpec((1, CT, Hkv * Dh), lambda b, c: (b, c, 0))
    tdspec = pl.BlockSpec((1, H * Dh), lambda b, c: (0, 0))

    # TODO(synk): if B == 1, split heads across an extra parallel grid axis so both
    # TensorCores get work (requires the per-group lane width to stay 128-aligned).
    out = pl.pallas_call(
        functools.partial(_gla_kernel, H=H, Hkv=Hkv, Dh=Dh, SC=SC,
                          scale=scale, mxu_dtype=mxu_dtype),
        out_shape=jax.ShapeDtypeStruct((B, TP, H * Dh), q.dtype),
        grid=(B, NC),
        in_specs=[qspec, kvspec, kvspec, qspec, tdspec, qspec],
        out_specs=qspec,
        scratch_shapes=[pltpu.VMEM((H, Dh, Dh), jnp.float32)],   # carried state
        compiler_params=_compiler_params(("parallel", "arbitrary")),
    )(qp, kp, vp, decp, td2, gatep)
    return out[:, :T] if TP != T else out


# ----------------------------------------------------------------------------
# Pure-JAX references (correctness checks only)
# ----------------------------------------------------------------------------
def _mm_ref(x, w, *, activation=None, out_dtype=None):
    out_dtype = out_dtype or x.dtype
    r = jnp.dot(x, w, preferred_element_type=jnp.float32)
    if activation == "tanh":
        r = jnp.tanh(r)
    return r.astype(out_dtype)


def _mixmm_ref(x, dx, maa, w, *, lora=None, w2=None, activation=None,
               out_dtype=None):
    out_dtype = out_dtype or x.dtype
    m = maa.reshape(1, -1).astype(jnp.float32)
    if lora is not None:
        m = m + jnp.dot(lora, w2, preferred_element_type=jnp.float32)
    xi = x.astype(jnp.float32) + dx.astype(jnp.float32) * m
    r = jnp.dot(xi.astype(w.dtype), w, preferred_element_type=jnp.float32)
    if activation == "tanh":
        r = jnp.tanh(r)
    return r.astype(out_dtype)


def gla_gated_reference(q, k, v, dec, td, gate, *, H, Hkv, Dh):
    """Exact recurrent reference.  q/dec/gate: (B,T,H*Dh); k/v: (B,T,Hkv*Dh)."""
    B, T, _ = q.shape
    n_rep = H // Hkv

    def to_heads(t, nh):
        return t.reshape(B, T, nh, Dh).transpose(0, 2, 1, 3).astype(jnp.float32)

    qf, decf, gatef = to_heads(q, H), to_heads(dec, H), to_heads(gate, H)
    kf, vf = to_heads(k, Hkv), to_heads(v, Hkv)
    kf = jnp.repeat(kf, n_rep, axis=1)
    vf = jnp.repeat(vf, n_rep, axis=1)

    g = -jnp.exp(decf + td.reshape(1, H, 1, Dh).astype(jnp.float32))
    kf = kf * (1.0 - jnp.exp(g))
    scale = Dh ** (-0.5)

    def step(S, inp):
        qt, kt, vt, gt = inp
        S = S * jnp.exp(gt)[..., :, None] + kt[..., :, None] * vt[..., None, :]
        ot = jnp.einsum("bhk,bhkv->bhv", qt * scale, S)
        return S, ot

    S0 = jnp.zeros((B, H, Dh, Dh), jnp.float32)
    xs = tuple(t.transpose(2, 0, 1, 3) for t in (qf, kf, vf, g))
    _, o = lax.scan(step, S0, xs)
    o = o.transpose(1, 2, 0, 3) * jax.nn.sigmoid(gatef)        # (B, H, T, Dh)
    return o.transpose(0, 2, 1, 3).reshape(B, T, H * Dh)


# ----------------------------------------------------------------------------
# Parameters (deterministic; shapes match RWKV6Attention.__init__,
# projection weights stored pre-transposed as (in_features, out_features)).
# ----------------------------------------------------------------------------
def init_params(key, cfg):
    C = cfg["hidden_size"]
    H = cfg["num_attention_heads"]
    Hkv = cfg["num_key_value_heads"]
    Dh = C // H
    dim_att = H * Dh
    n_layer = cfg["num_hidden_layers"]
    layer_id = cfg["layer_idx"]
    D_MIX = 32 if C < 4096 else 64
    D_DEC = 64 if C < 4096 else 128

    ks = jax.random.split(key, 14)
    u = lambda k, shape, s: jax.random.uniform(k, shape, jnp.float32, -s, s)

    ratio_0_to_1 = layer_id / (n_layer - 1)
    n = jnp.arange(dim_att, dtype=jnp.float32)
    decay_speed = -6.0 + 5.0 * (n / (dim_att - 1)) ** (0.7 + 1.3 * ratio_0_to_1)

    return dict(
        time_maa_x=jnp.ones((1, 1, C), jnp.float32),   # spec: ddd zeroed -> 1 - 0**r
        time_maa_r=u(ks[0], (1, 1, C), 0.01),
        time_maa_k=u(ks[1], (1, 1, C), 0.01),
        time_maa_v=u(ks[2], (1, 1, C), 0.01),
        time_maa_w=u(ks[3], (1, 1, C), 0.01),
        time_maa_g=u(ks[4], (1, 1, C), 0.01),
        time_maa_w1=u(ks[5], (C, D_MIX * 5), 0.01),
        time_maa_w2=u(ks[6], (5, D_MIX, C), 0.01),
        time_decay=decay_speed.reshape(1, 1, dim_att),
        time_decay_w1=u(ks[7], (C, D_DEC), 0.01),
        time_decay_w2=u(ks[8], (D_DEC, dim_att), 0.01),
        wq=u(ks[9], (C, dim_att), 0.05),
        wk=u(ks[10], (C, Hkv * Dh), 0.05),
        wv=u(ks[11], (C, Hkv * Dh), 0.05),
        wo=u(ks[12], (dim_att, C), 0.05),
        wg=u(ks[13], (C, dim_att), 0.05),
    )


# ----------------------------------------------------------------------------
# Forward pass (mirrors RWKV6Attention.forward; no cache / no dropout in eval)
# ----------------------------------------------------------------------------
def rwkv6_attention_forward(params, hidden_states, cfg, use_pallas=True,
                            compute_dtype=jnp.bfloat16):
    B, T, C = hidden_states.shape
    H = cfg["num_attention_heads"]
    Hkv = cfg["num_key_value_heads"]
    Dh = C // H
    dim_att = H * Dh
    kv_dim = Hkv * Dh
    cd = compute_dtype
    D_MIX = params["time_maa_w2"].shape[1]

    x = hidden_states
    # F.pad(x, (0,0,1,-1)) - x  -> token-shift difference
    dx = jnp.pad(x, ((0, 0), (1, 0), (0, 0)))[:, :T, :] - x
    x2 = x.reshape(B * T, C).astype(cd)
    dx2 = dx.reshape(B * T, C).astype(cd)

    wc = lambda n: params[n].astype(cd)
    wq, wk, wv, wo, wg = wc("wq"), wc("wk"), wc("wv"), wc("wo"), wc("wg")
    w1 = wc("time_maa_w1")
    dw1, dw2 = wc("time_decay_w1"), wc("time_decay_w2")
    w2_all = params["time_maa_w2"].astype(cd)                  # (5, D_MIX, C)
    maa = {n: params["time_maa_" + n].reshape(1, C)
           for n in ("x", "r", "k", "v", "w", "g")}

    if use_pallas:
        mm, mixmm = pallas_matmul, pallas_mix_matmul
    else:
        mm, mixmm = _mm_ref, _mixmm_ref

    # Low-rank token-shift mix activations (tanh fused in the matmul epilogue).
    lora = mixmm(x2, dx2, maa["x"], w1, activation="tanh")     # (B*T, 5*D_MIX)
    lsl = lambda i: lax.slice_in_dim(lora, i * D_MIX, (i + 1) * D_MIX, axis=1)

    # Fused mix + LoRA + projection (xr/xk/xv/xw/xg and mr..mg never hit HBM).
    q = mixmm(x2, dx2, maa["r"], wq, lora=lsl(0), w2=w2_all[0])
    k = mixmm(x2, dx2, maa["k"], wk, lora=lsl(1), w2=w2_all[1])
    v = mixmm(x2, dx2, maa["v"], wv, lora=lsl(2), w2=w2_all[2])
    dec1 = mixmm(x2, dx2, maa["w"], dw1, lora=lsl(3), w2=w2_all[3],
                 activation="tanh")                            # (B*T, D_DEC)
    dec = mm(dec1, dw2)                                        # (B*T, dim_att)
    gate = mixmm(x2, dx2, maa["g"], wg, lora=lsl(4), w2=w2_all[4])  # logits

    # Lane-dense, transpose-free head layout for the GLA kernel.
    q3 = q.reshape(B, T, dim_att)
    k3 = k.reshape(B, T, kv_dim)
    v3 = v.reshape(B, T, kv_dim)
    dec3 = dec.reshape(B, T, dim_att)
    gate3 = gate.reshape(B, T, dim_att)
    td = params["time_decay"].reshape(H, Dh)

    # TODO(synk): past_key_value cache update path not implemented (no cache here).
    if use_pallas:
        o = pallas_gla_gated(q3, k3, v3, dec3, td, gate3,
                             H=H, Hkv=Hkv, Dh=Dh, mxu_dtype=cd)
    else:
        o = gla_gated_reference(q3, k3, v3, dec3, td, gate3, H=H, Hkv=Hkv, Dh=Dh)

    o2 = o.reshape(B * T, dim_att).astype(cd)
    out = mm(o2, wo, out_dtype=hidden_states.dtype)
    return out.reshape(B, T, C)


# ----------------------------------------------------------------------------
if __name__ == "__main__":
    cfg = dict(
        hidden_size=32,
        num_attention_heads=4,
        num_key_value_heads=2,
        num_hidden_layers=4,
        layer_idx=1,
        attention_dropout=0.0,
    )
    key = jax.random.PRNGKey(0)
    kp, kx1, kx2 = jax.random.split(key, 3)
    params = init_params(kp, cfg)
    f32 = jnp.float32

    # 1) Small sequence, strict all-f32 check (single chunk / sub-chunk).
    B, T = 2, 8
    x_small = jax.random.normal(kx1, (B, T, cfg["hidden_size"]), f32)
    out = jax.block_until_ready(rwkv6_attention_forward(
        params, x_small, cfg, use_pallas=True, compute_dtype=f32))
    ref = jax.block_until_ready(rwkv6_attention_forward(
        params, x_small, cfg, use_pallas=False, compute_dtype=f32))
    assert out.shape == (B, T, cfg["hidden_size"])
    err = float(jnp.max(jnp.abs(out - ref)))
    assert err < 2e-4, f"small-seq f32 max_err={err}"

    # 2) Long sequence, strict f32 check (CT=128 chunks, SC=32 sub-chunks, carried state).
    B2, T2 = 2, 256
    x_long = jax.random.normal(kx2, (B2, T2, cfg["hidden_size"]), f32)
    out2 = jax.block_until_ready(rwkv6_attention_forward(
        params, x_long, cfg, use_pallas=True, compute_dtype=f32))
    ref2 = jax.block_until_ready(rwkv6_attention_forward(
        params, x_long, cfg, use_pallas=False, compute_dtype=f32))
    err2 = float(jnp.max(jnp.abs(out2 - ref2)))
    assert err2 < 1e-3, f"long-seq f32 max_err={err2}"

    # 3) Worst-case decay range (time_decay ~ 0  =>  |g| ~ 1): exercises the bounded
    #    sub-chunk re-referencing of exp(+/-cumsum) that prevents f32 overflow.
    params_fast = dict(params)
    params_fast["time_decay"] = jnp.zeros_like(params["time_decay"])
    out3 = jax.block_until_ready(rwkv6_attention_forward(
        params_fast, x_long, cfg, use_pallas=True, compute_dtype=f32))
    ref3 = jax.block_until_ready(rwkv6_attention_forward(
        params_fast, x_long, cfg, use_pallas=False, compute_dtype=f32))
    err3 = float(jnp.max(jnp.abs(out3 - ref3)))
    assert err3 < 2e-3, f"fast-decay f32 max_err={err3}"

    # 4) Default bf16 fast path: run and sanity-check against the f32 reference.
    out4 = jax.block_until_ready(rwkv6_attention_forward(
        params, x_long, cfg, use_pallas=True, compute_dtype=jnp.bfloat16))
    assert bool(jnp.all(jnp.isfinite(out4.astype(f32))))
    err4 = float(jnp.max(jnp.abs(out4.astype(f32) - ref2)))
    assert err4 < 6e-2, f"bf16 max_err={err4}"

    print("KERNEL_OK")
</pallas_src>

<mosaic_0001>
module attributes {stable_mosaic.version = 11 : i64} {
  func.func @_mix_matmul_kernel(%arg0: i32, %arg1: i32, %arg2: i32, %arg3: memref<16x32xf32, #tpu.memory_space<vmem>>, %arg4: memref<16x32xf32, #tpu.memory_space<vmem>>, %arg5: memref<1x32xf32, #tpu.memory_space<vmem>>, %arg6: memref<32x160xf32, #tpu.memory_space<vmem>>, %arg7: memref<16x160xf32, #tpu.memory_space<vmem>>, %arg8: memref<16x160xf32, #tpu.memory_space<vmem>>) attributes {dimension_semantics = [#tpu.dimension_semantics<parallel>, #tpu.dimension_semantics<parallel>, #tpu.dimension_semantics<arbitrary>], iteration_bounds = array<i64: 1, 1, 1>, scalar_prefetch = 0 : i64, scratch_operands = 1 : i64, tpu.core_type = #tpu.core_type<tc>, window_params = [{transform_indices = @transform_0, window_bounds = array<i64: 16, 32>}, {transform_indices = @transform_1, window_bounds = array<i64: 16, 32>}, {transform_indices = @transform_2, window_bounds = array<i64: 1, 32>}, {transform_indices = @transform_3, window_bounds = array<i64: 32, 160>}, {transform_indices = @transform_4, window_bounds = array<i64: 16, 160>}]} {
    %c0_i32 = arith.constant 0 : i32
    %0 = arith.cmpi eq, %arg2, %c0_i32 : i32
    %1 = arith.extui %0 : i1 to i32
    %c0_i32_0 = arith.constant 0 : i32
    %2 = arith.cmpi ne, %1, %c0_i32_0 : i32
    scf.if %2 {
      %cst_14 = arith.constant 0.000000e+00 : f32
      %17 = vector.broadcast %cst_14 : f32 to vector<16x160xf32>
      %c0_15 = arith.constant 0 : index
      %c0_16 = arith.constant 0 : index
      %18 = vector.load %arg8[%c0_15, %c0_16] : memref<16x160xf32, #tpu.memory_space<vmem>>, vector<16x160xf32>
      tpu.vector_store %arg8[%c0_15, %c0_16], %17 {strides = array<i32>} : memref<16x160xf32, #tpu.memory_space<vmem>>, vector<16x160xf32>,
    } else {
    }
    %c0 = arith.constant 0 : index
    %c0_1 = arith.constant 0 : index
    %3 = vector.load %arg5[%c0, %c0_1] : memref<1x32xf32, #tpu.memory_space<vmem>>, vector<1x32xf32>
    %c0_2 = arith.constant 0 : index
    %c0_3 = arith.constant 0 : index
    %4 = vector.load %arg3[%c0_2, %c0_3] : memref<16x32xf32, #tpu.memory_space<vmem>>, vector<16x32xf32>
    %c0_4 = arith.constant 0 : index
    %c0_5 = arith.constant 0 : index
    %5 = vector.load %arg4[%c0_4, %c0_5] : memref<16x32xf32, #tpu.memory_space<vmem>>, vector<16x32xf32>
    %6 = vector.broadcast %3 : vector<1x32xf32> to vector<16x32xf32>
    %7 = arith.mulf %5, %6 : vector<16x32xf32>
    %8 = arith.addf %4, %7 : vector<16x32xf32>
    %c0_6 = arith.constant 0 : index
    %c0_7 = arith.constant 0 : index
    %9 = vector.load %arg8[%c0_6, %c0_7] : memref<16x160xf32, #tpu.memory_space<vmem>>, vector<16x160xf32>
    %c0_8 = arith.constant 0 : index
    %c0_9 = arith.constant 0 : index
    %10 = vector.load %arg6[%c0_8, %c0_9] : memref<32x160xf32, #tpu.memory_space<vmem>>, vector<32x160xf32>
    %cst = arith.constant dense<0.000000e+00> : vector<16x160xf32>
    %11 = tpu.matmul %8, %10, %cst {dimension_numbers = #tpu.dot_dimension_numbers<[1], [0], [0], [1], [0, 0, 1, 1], [], []>} : vector<16x32xf32>, vector<32x160xf32>, vector<16x160xf32> -> vector<16x160xf32>
    %12 = arith.addf %9, %11 : vector<16x160xf32>
    %c0_10 = arith.constant 0 : index
    %c0_11 = arith.constant 0 : index
    %13 = vector.load %arg8[%c0_10, %c0_11] : memref<16x160xf32, #tpu.memory_space<vmem>>, vector<16x160xf32>
    tpu.vector_store %arg8[%c0_10, %c0_11], %12 {strides = array<i32>} : memref<16x160xf32, #tpu.memory_space<vmem>>, vector<16x160xf32>,
    %c0_i32_12 = arith.constant 0 : i32
    %14 = arith.cmpi eq, %arg2, %c0_i32_12 : i32
    %15 = arith.extui %14 : i1 to i32
    %c0_i32_13 = arith.constant 0 : i32
    %16 = arith.cmpi ne, %15, %c0_i32_13 : i32
    scf.if %16 {
      %c0_14 = arith.constant 0 : index
      %c0_15 = arith.constant 0 : index
      %17 = vector.load %arg8[%c0_14, %c0_15] : memref<16x160xf32, #tpu.memory_space<vmem>>, vector<16x160xf32>
      %18 = math.tanh %17 : vector<16x160xf32>
      %c0_16 = arith.constant 0 : index
      %c0_17 = arith.constant 0 : index
      %19 = vector.load %arg7[%c0_16, %c0_17] : memref<16x160xf32, #tpu.memory_space<vmem>>, vector<16x160xf32>
      tpu.vector_store %arg7[%c0_16, %c0_17], %18 {strides = array<i32>} : memref<16x160xf32, #tpu.memory_space<vmem>>, vector<16x160xf32>,
    } else {
    }
    return
  }
  func.func @transform_0(%arg0: i32, %arg1: i32, %arg2: i32) -> (i32, i32) {
    %c0_i32 = arith.constant 0 : i32
    return %arg0, %arg2 : i32, i32
  }
  func.func @transform_1(%arg0: i32, %arg1: i32, %arg2: i32) -> (i32, i32) {
    %c0_i32 = arith.constant 0 : i32
    return %arg0, %arg2 : i32, i32
  }
  func.func @transform_2(%arg0: i32, %arg1: i32, %arg2: i32) -> (i32, i32) {
    %c0_i32 = arith.constant 0 : i32
    %c0_i32_0 = arith.constant 0 : i32
    return %c0_i32, %arg2 : i32, i32
  }
  func.func @transform_3(%arg0: i32, %arg1: i32, %arg2: i32) -> (i32, i32) {
    %c0_i32 = arith.constant 0 : i32
    return %arg2, %arg1 : i32, i32
  }
  func.func @transform_4(%arg0: i32, %arg1: i32, %arg2: i32) -> (i32, i32) {
    %c0_i32 = arith.constant 0 : i32
    return %arg0, %arg1 : i32, i32
  }
}

</mosaic_0001>

<llo_original>
// kernel: tpu_custom_call.1
$region0: #{tpu_custom_call.1}
  #allocation0 [shape = 'u32[]', space=smem, size = 0x4, offset = 0x4, fixed_abs, tag = 'smem constant byte address 0x4 - core index']
  #allocation1 [shape = 'u32[144,128]{1,0:T(1,128)}', space=vmem, size = 0x12000, scoped, tag = 'internal scratch']
  #allocation2 [shape = 'f32[16,160]{1,0:T(8,128)}', space=vmem, size = 0x4000, scoped, tag = 'scratch operand']
  %s0 = inlined_call_operand.hbm [shape: f32[16,32], index: 0, kind: input, shape index: {}]
  %s1 = inlined_call_operand.hbm [shape: f32[16,32], index: 1, kind: input, shape index: {}]
  %s2 = inlined_call_operand.hbm [shape: f32[1,32], index: 2, kind: input, shape index: {}]
  %s3 = inlined_call_operand.hbm [shape: f32[32,160], index: 3, kind: input, shape index: {}]
  %s4 = inlined_call_operand.hbm [shape: f32[16,160], index: 4, kind: output, shape index: {}]
  %s5 = sld [smem:[#allocation0]]
  $region50: #{tpu_custom_call.1} parent=0
    _
  %s7 = ssub.s32 1, %s5
  %s8 = scalar_select 0, %s7, %s5
  $region1: #{tpu_custom_call.1} parent=0
    #allocation3 [shape = 'u8[8192]{0}', space=vmem, size = 0x2000, scoped, tag = 'input window, operand 0, single buffered']
    #allocation4 [shape = 's32[1]{0}', space=sflag, size = 0x4, scoped, tag = 'scoped memory for tpu_custom_call.1']
    #allocation5 [shape = 's32[1]{0}', space=sflag, size = 0x4, scoped, tag = 'scoped memory for tpu_custom_call.1']
    #allocation6 [shape = 'u8[8192]{0}', space=vmem, size = 0x2000, scoped, tag = 'input window, operand 1, single buffered']
    #allocation7 [shape = 's32[1]{0}', space=sflag, size = 0x4, scoped, tag = 'scoped memory for tpu_custom_call.1']
    #allocation8 [shape = 'u8[512]{0}', space=vmem, size = 0x400, scoped, tag = 'input window, operand 2, single buffered']
    #allocation9 [shape = 'u8[32768]{0}', space=vmem, size = 0x8000, scoped, tag = 'input window, operand 3, single buffered']
    #allocation10 [shape = 's32[1]{0}', space=sflag, size = 0x4, scoped, tag = 'scoped memory for tpu_custom_call.1']
    #allocation11 [shape = 'u8[16384]{0}', space=vmem, size = 0x4000, scoped, tag = 'output window, operand 0, single buffered']
    %9 = vsyncpa [#allocation4], 0
    %10 = vsyncpa [#allocation7], 0
    %11 = vsyncpa [#allocation10], 0
    %12 = vsyncpa [#allocation5], 0
    // Predicated region
    $region2: #{tpu_custom_call.1} parent=1 // pred_check
      _
    $region3: #{tpu_custom_call.1} parent=1 // pred_check_branch
      %14 = sbr.rel (0) target = $region5
    $region4: #{tpu_custom_call.1} parent=1 // pred_region
      %s16 = ssub.s32 256, 256
      %17 = vsyncadd [#allocation4], %s16
      %s18 = sshll.u32 [#allocation3], 4
      %s19 = int_to_ptr.vmem [resolvable:$true] %s18
      %24 = dma.hbm_to_vmem [thread:$0]  %s0, 256, %s19, [#allocation4], 128, 128, 8
    $region5: #{tpu_custom_call.1} parent=1 // pred_fallthru
      _
    // Predicated region
    $region6: #{tpu_custom_call.1} parent=1 // pred_check
      _
    $region7: #{tpu_custom_call.1} parent=1 // pred_check_branch
      %26 = sbr.rel (0) target = $region9
    $region8: #{tpu_custom_call.1} parent=1 // pred_region
      %s28 = ssub.s32 256, 256
      %29 = vsyncadd [#allocation7], %s28
      %s30 = sshll.u32 [#allocation6], 4
      %s31 = int_to_ptr.vmem [resolvable:$true] %s30
      %36 = dma.hbm_to_vmem [thread:$0]  %s1, 256, %s31, [#allocation7], 128, 128, 8
    $region9: #{tpu_custom_call.1} parent=1 // pred_fallthru
      _
    // Predicated region
    $region10: #{tpu_custom_call.1} parent=1 // pred_check
      _
    $region11: #{tpu_custom_call.1} parent=1 // pred_check_branch
      %38 = sbr.rel (0) target = $region13
    $region12: #{tpu_custom_call.1} parent=1 // pred_region
      %s40 = ssub.s32 16, 16
      %41 = vsyncadd [#allocation7], %s40
      %s43 = sshll.u32 [#allocation8], 4
      %s44 = int_to_ptr.vmem [resolvable:$true] %s43
      %46 = dma.hbm_to_vmem [thread:$0]  %s2, 16, %s44, [#allocation7]
    $region13: #{tpu_custom_call.1} parent=1 // pred_fallthru
      _
    // Predicated region
    $region14: #{tpu_custom_call.1} parent=1 // pred_check
      _
    $region15: #{tpu_custom_call.1} parent=1 // pred_check_branch
      %48 = sbr.rel (0) target = $region17
    $region16: #{tpu_custom_call.1} parent=1 // pred_region
      %s50 = ssub.s32 1024, 1024
      %51 = vsyncadd [#allocation10], %s50
      %s52 = sshll.u32 [#allocation9], 4
      %s53 = int_to_ptr.vmem [resolvable:$true] %s52
      %58 = dma.hbm_to_vmem [thread:$0]  %s3, 1024, %s53, [#allocation10], 256, 256, 16
    $region17: #{tpu_custom_call.1} parent=1 // pred_fallthru
      _
    // Predicated region
    $region18: #{tpu_custom_call.1} parent=1 // pred_check
      _
    $region19: #{tpu_custom_call.1} parent=1 // pred_check_branch
      %60 = sbr.rel (0) target = $region21
    $region20: #{tpu_custom_call.1} parent=1 // pred_region
      %61 = dma.done [#allocation4], 256
    $region21: #{tpu_custom_call.1} parent=1 // pred_fallthru
      _
    // Predicated region
    $region22: #{tpu_custom_call.1} parent=1 // pred_check
      _
    $region23: #{tpu_custom_call.1} parent=1 // pred_check_branch
      %63 = sbr.rel (0) target = $region25
    $region24: #{tpu_custom_call.1} parent=1 // pred_region
      %64 = dma.done [#allocation7], 256
    $region25: #{tpu_custom_call.1} parent=1 // pred_fallthru
      _
    // Predicated region
    $region26: #{tpu_custom_call.1} parent=1 // pred_check
      _
    $region27: #{tpu_custom_call.1} parent=1 // pred_check_branch
      %66 = sbr.rel (0) target = $region29
    $region28: #{tpu_custom_call.1} parent=1 // pred_region
      %67 = dma.done [#allocation7], 16
    $region29: #{tpu_custom_call.1} parent=1 // pred_fallthru
      _
    // Predicated region
    $region30: #{tpu_custom_call.1} parent=1 // pred_check
      _
    $region31: #{tpu_custom_call.1} parent=1 // pred_check_branch
      %69 = sbr.rel (0) target = $region33
    $region32: #{tpu_custom_call.1} parent=1 // pred_region
      %70 = dma.done [#allocation10], 1024
    $region33: #{tpu_custom_call.1} parent=1 // pred_fallthru
      _
    %p71 = scmp.eq.s32.totalorder 0, 0
    // Predicated region
    $region34: #{tpu_custom_call.1} parent=1 // pred_check
      %p72 = pneg %p71
    $region35: #{tpu_custom_call.1} parent=1 // pred_check_branch
      %74 = sbr.rel (%p72) target = $region37
    $region36: #{tpu_custom_call.1} parent=1 // pred_region
      %75 = vst [vmem:[#allocation2] sm:$0xff] 0.0
      %vm76 = vcmask 261120
      %77 = vst.msk [vmem:[#allocation2 + $0x8] sm:$0xff] %vm76, 0.0
      %78 = vst [vmem:[#allocation2 + $0x10] sm:$0xff] 0.0
      %79 = vst.msk [vmem:[#allocation2 + $0x18] sm:$0xff] %vm76, 0.0
    $region37: #{tpu_custom_call.1} parent=1 // pred_fallthru
      _
    %v80 = vld [vmem:[#allocation8] sm:$0x1]
    %v81 = vld [vmem:[#allocation3] sm:$0xff]
    %v82 = vld [vmem:[#allocation3 + $0x8] sm:$0xff]
    %v83 = vld [vmem:[#allocation6] sm:$0xff]
    %v84 = vld [vmem:[#allocation6 + $0x8] sm:$0xff]
    %v86 = vlaneseq
    %v87 = vshrl.u32 %v86, 7
    %v88 = vsub.s32 0, %v87
    %v89 = vrot.slane %v80, %v88
    %v91 = vmul.f32 %v83, %v89
    %v92 = vmul.f32 %v84, %v89
    %v93 = vadd.f32 %v81, %v91
    %v94 = vadd.f32 %v82, %v92
    %v95 = vld [vmem:[#allocation2] sm:$0xff]
    %v96 = vld [vmem:[#allocation2 + $0x8] sm:$0xff]
    %v97 = vld [vmem:[#allocation2 + $0x10] sm:$0xff]
    %v98 = vld [vmem:[#allocation2 + $0x18] sm:$0xff]
    %v99 = vld [vmem:[#allocation9] sm:$0xff]
    %v100 = vld [vmem:[#allocation9 + $0x8] sm:$0xff]
    %v101 = vld [vmem:[#allocation9 + $0x10] sm:$0xff]
    %v102 = vld [vmem:[#allocation9 + $0x18] sm:$0xff]
    %v103 = vld [vmem:[#allocation9 + $0x20] sm:$0xff]
    %v104 = vld [vmem:[#allocation9 + $0x28] sm:$0xff]
    %v105 = vld [vmem:[#allocation9 + $0x30] sm:$0xff]
    %v106 = vld [vmem:[#allocation9 + $0x38] sm:$0xff]
    %vm107 = vcmask 261120
    %v109 = vsel %vm107, %v93, 0
    %v112 = vsel %vm107, %v94, 0
    %114 = vmatprep.subr.mxu0 %v100
    %115 = vmatpush1.msra.mxu0 %v99
    %116 = vmatprep.subr.mxu0 %v102
    %117 = vmatpush1.msra.mxu0 %v101
    %118 = vmatprep.subr.mxu0 %v104
    %119 = vmatpush1.msra.mxu0 %v103
    %120 = vmatprep.subr.mxu0 %v106
    %121 = vmatpush1.msra.mxu0 %v105
    %122 = vmatprep.subr.mxu0 0.0
    %123 = vmatpush1.msra.mxu0 0.0
    %124 = vmatprep.subr.mxu0 0.0
    %125 = vmatpush1.msra.mxu0 0.0
    %126 = vmatprep.subr.mxu0 0.0
    %127 = vmatpush1.msra.mxu0 0.0
    %128 = vmatprep.subr.mxu0 0.0
    %129 = vmatpush1.msra.mxu0 0.0
    %130 = vmatprep.subr.mxu0 0.0
    %131 = vmatpush1.msra.mxu0 0.0
    %132 = vmatprep.subr.mxu0 0.0
    %133 = vmatpush1.msra.mxu0 0.0
    %134 = vmatprep.subr.mxu0 0.0
    %135 = vmatpush1.msra.mxu0 0.0
    %136 = vmatprep.subr.mxu0 0.0
    %137 = vmatpush1.msra.mxu0 0.0
    %138 = vmatprep.subr.mxu0 0.0
    %139 = vmatpush1.msra.mxu0 0.0
    %140 = vmatprep.subr.mxu0 0.0
    %141 = vmatpush1.msra.mxu0 0.0
    %142 = vmatprep.subr.mxu0 0.0
    %143 = vmatpush1.msra.mxu0 0.0
    %144 = vmatprep.subr.mxu0 0.0
    %145 = vmatpush1.msra.mxu0 0.0
    %146 = vmatprep.subr.mxu0 0.0
    %147 = vmatpush1.msra.mxu0 0.0
    %148 = vmatprep.subr.mxu0 0.0
    %149 = vmatpush1.msra.mxu0 0.0
    %150 = vmatprep.subr.mxu0 0.0
    %151 = vmatpush1.msra.mxu0 0.0
    %152 = vmatprep.subr.mxu0 0.0
    %153 = vmatpush1.msra.mxu0 0.0
    %154 = vmatprep.subr.mxu0 0.0
    %155 = vmatpush1.msra.mxu0 0.0
    %156 = vmatprep.subr.mxu0 0.0
    %157 = vmatpush1.msra.mxu0 0.0
    %158 = vmatprep.subr.mxu0 0.0
    %159 = vmatpush1.msra.mxu0 0.0
    %160 = vmatprep.subr.mxu0 0.0
    %161 = vmatpush1.msra.mxu0 0.0
    %162 = vmatprep.subr.mxu0 0.0
    %163 = vmatpush1.msra.mxu0 0.0
    %164 = vmatprep.subr.mxu0 0.0
    %165 = vmatpush1.msra.mxu0 0.0
    %166 = vmatprep.subr.mxu0 0.0
    %167 = vmatpush1.msra.mxu0 0.0
    %168 = vmatprep.subr.mxu0 0.0
    %169 = vmatpush1.msra.mxu0 0.0
    %170 = vmatprep.subr.mxu0 0.0
    %171 = vmatpush1.msra.mxu0 0.0
    %172 = vmatprep.subr.mxu0 0.0
    %173 = vmatpush1.msra.mxu0 0.0
    %174 = vmatprep.subr.mxu0 0.0
    %175 = vmatpush1.msra.mxu0 0.0
    %176 = vmatprep.subr.mxu0 0.0
    %177 = vmatpush1.msra.mxu0 0.0
    %178 = vmatprep.mubr.f32.mxu0 0.0
    %179 = vmatmul.mubr.f32.gmra.mrb[0].mxu0 %v109
    %v180 = vpop.f32.mrb[0].mxu0
    %v181 = vadd.f32 0.0, %v180
    %v182 = vpop.f32.mrb[0].mxu0
    %v183 = vadd.f32 0.0, %v182
    %184 = vmatprep.mubr.f32.mxu0 0.0
    %185 = vmatmul.mubr.f32.gmra.mrb[0].mxu0 %v112
    %v186 = vpop.f32.mrb[0].mxu0
    %v187 = vadd.f32 0.0, %v186
    %v188 = vpop.f32.mrb[0].mxu0
    %v189 = vadd.f32 0.0, %v188
    %190 = vdwg.mxu0
    %v191 = vadd.f32 %v95, %v181
    %v192 = vadd.f32 %v96, %v183
    %v193 = vadd.f32 %v97, %v187
    %v194 = vadd.f32 %v98, %v189
    %195 = vst [vmem:[#allocation2] sm:$0xff] %v191
    %196 = vst.msk [vmem:[#allocation2 + $0x8] sm:$0xff] %vm107, %v192
    %197 = vst [vmem:[#allocation2 + $0x10] sm:$0xff] %v193
    %198 = vst.msk [vmem:[#allocation2 + $0x18] sm:$0xff] %vm107, %v194
    // Predicated region
    $region38: #{tpu_custom_call.1} parent=1 // pred_check
      %p199 = pneg %p71
    $region39: #{tpu_custom_call.1} parent=1 // pred_check_branch
      %201 = sbr.rel (%p199) target = $region41
    $region40: #{tpu_custom_call.1} parent=1 // pred_region
      %v202 = vld [vmem:[#allocation2] sm:$0xff]
      %v203 = vld [vmem:[#allocation2 + $0x8] sm:$0xff]
      %v204 = vld [vmem:[#allocation2 + $0x10] sm:$0xff]
      %v205 = vld [vmem:[#allocation2 + $0x18] sm:$0xff]
      %v206 = vtanh.pop %v202
      %v207 = vtanh.pop %v203
      %v208 = vtanh.pop %v204
      %v209 = vtanh.pop %v205
      %210 = vst [vmem:[#allocation11] sm:$0xff] %v206
      %211 = vst.msk [vmem:[#allocation11 + $0x8] sm:$0xff] %vm107, %v207
      %212 = vst [vmem:[#allocation11 + $0x10] sm:$0xff] %v208
      %213 = vst.msk [vmem:[#allocation11 + $0x18] sm:$0xff] %vm107, %v209
    $region41: #{tpu_custom_call.1} parent=1 // pred_fallthru
      _
    // Predicated region
    $region42: #{tpu_custom_call.1} parent=1 // pred_check
      _
    $region43: #{tpu_custom_call.1} parent=1 // pred_check_branch
      %215 = sbr.rel (0) target = $region45
    $region44: #{tpu_custom_call.1} parent=1 // pred_region
      %s217 = ssub.s32 512, 512
      %218 = vsyncadd [#allocation5], %s217
      %s219 = sshll.u32 [#allocation11], 4
      %s220 = int_to_ptr.vmem [resolvable:$true] %s219
      %225 = dma.vmem_to_hbm [thread:$0]  %s220, 512, %s4, [#allocation5], 256, 256, 16
    $region45: #{tpu_custom_call.1} parent=1 // pred_fallthru
      _
    // Predicated region
    $region46: #{tpu_custom_call.1} parent=1 // pred_check
      _
    $region47: #{tpu_custom_call.1} parent=1 // pred_check_branch
      %227 = sbr.rel (0) target = $region49
    $region48: #{tpu_custom_call.1} parent=1 // pred_region
      %228 = dma.done [#allocation5], 512
    $region49: #{tpu_custom_call.1} parent=1 // pred_fallthru
      _
    %229 = vsyncpa [#allocation4], 1
    %230 = vsyncpa [#allocation7], 1
    %231 = vsyncpa [#allocation10], 1
    %232 = vsyncpa [#allocation5], 1

</llo_original>
